<compile_context>
chip_gen: v5e
topology: v5e:2x2
jax: 0.10.0
libtpu: 0.0.40
codegen_flags: <defaults>
</compile_context>

<pallas_src>
import math

import jax
import jax.numpy as jnp
from jax import lax
from jax.experimental import pallas as pl
from jax.experimental.pallas import tpu as pltpu

LANE = 128
PAIR_STEP_BYTES = 8 * 1024 * 1024   # ~4 MiB of DMA per input per grid step
VMEM_CAP_BYTES = 48 * 1024 * 1024   # headroom below v7x's 64 MiB physical VMEM


def _cdiv(a, b):
    return -(-a // b)


def _round_up(a, b):
    return _cdiv(a, b) * b


def _sublane_quantum(dtype):
    # Minimum second-to-minor block granularity: 8 (4-byte), 16 (2-byte), 32 (1-byte).
    return max(8, 32 // jnp.dtype(dtype).itemsize)


def _make_dice_kernel(tile_rows, sub, steps_per_core, valid_rows, needs_mask):
    n_slabs = tile_rows // sub
    unroll = max(1, min(8, n_slabs))

    def kernel(o_ref, t_ref, inter_ref, total_ref, acc_i, acc_s):
        p = pl.program_id(0)
        k = pl.program_id(1)

        @pl.when(k == 0)
        def _init():
            acc_i[...] = jnp.zeros_like(acc_i)
            acc_s[...] = jnp.zeros_like(acc_s)

        if needs_mask:
            base_row = (p * steps_per_core + k) * tile_rows
            row_iota = lax.broadcasted_iota(jnp.int32, (1, sub, 1), 1)

        def body(j, carry):
            r0 = pl.multiple_of(j * sub, sub)
            o = o_ref[:, pl.ds(r0, sub), :]
            t = t_ref[:, pl.ds(r0, sub), :]
            # Fuzzy intersection: exact in the native dtype (min of two representable
            # values is representable).  min(a,b)+max(a,b) == a+b, so the second
            # accumulator carries sum(o)+sum(t) instead of a separate union.
            mn = jnp.minimum(o, t).astype(jnp.float32)
            sm = o.astype(jnp.float32) + t.astype(jnp.float32)
            if needs_mask:
                # Zero the contribution of rows beyond the real data (OOB / stale
                # pipeline-buffer rows of the ragged last tile and clamped tiles).
                valid = (base_row + r0 + row_iota) < valid_rows   # (1, sub, 1)
                mn = jnp.where(valid, mn, 0.0)
                sm = jnp.where(valid, sm, 0.0)
            acc_i[...] += mn
            acc_s[...] += sm
            return carry

        lax.fori_loop(0, n_slabs, body, 0, unroll=unroll)

        # Finalize once per parallel block: collapse only the sublane axis and emit a
        # lane-dense (C, 128) partial; the wrapper does the lane/channel reduction
        # and the dice math (keeps the two TensorCore partials independent).
        @pl.when(k == pl.num_programs(1) - 1)
        def _finalize():
            inter_ref[0] = jnp.sum(acc_i[...], axis=1)
            total_ref[0] = jnp.sum(acc_s[...], axis=1)

    return kernel


def dice_loss(output, target, *, _pair_step_bytes=PAIR_STEP_BYTES):
    """Pallas DiceLoss forward. `output`, `target`: same shape; dim 0 squeezed if size 1."""
    # torch.squeeze(x, 0): drop dim 0 only if it has size 1 (static in JAX).
    if output.shape[0] == 1:
        output = jnp.squeeze(output, axis=0)
    if target.shape[0] == 1:
        target = jnp.squeeze(target, axis=0)
    assert output.shape == target.shape, (output.shape, target.shape)
    assert output.ndim == 3, output.shape   # (C, H, W) after the squeeze

    c = output.shape[0]
    hw = math.prod(output.shape[1:])

    sub = max(_sublane_quantum(output.dtype), _sublane_quantum(target.dtype))
    row_pair_bytes = c * LANE * (jnp.dtype(output.dtype).itemsize
                                 + jnp.dtype(target.dtype).itemsize)

    rows_exact = _cdiv(hw, LANE)

    # Per-step row budget (~4 MiB of DMA per input per step), multiple of `sub`.
    budget_rows = max(sub, (_pair_step_bytes // row_pair_bytes) // sub * sub)

    n_tiles = _cdiv(rows_exact, budget_rows)
    n_par = 2 if n_tiles >= 2 else 1            # v7x: shard rows across both TCs
    steps_per_core = _cdiv(n_tiles, n_par)
    n_tiles = n_par * steps_per_core
    # Balance tile size so the last tile is nearly full (no wasted DMA step).
    tile_rows = _round_up(_cdiv(rows_exact, n_tiles), sub)
    coverage_rows = n_tiles * tile_rows

    # HBM layout: (C, rows, 128) lane-dense.  Only pad (a full copy) when the spatial
    # size is not lane-aligned or the whole tensor is smaller than one tile; the
    # ragged row tail of large lane-aligned inputs is handled by in-kernel masking.
    rows_hbm = rows_exact
    if hw % LANE != 0 or rows_exact < tile_rows:
        rows_hbm = max(rows_exact, tile_rows)
    # TODO(synk): lane-level masking of the final partial row would also remove the
    # pad copy for spatial sizes that are not multiples of 128.

    def _prep(x):
        x = x.reshape(c, hw)
        if rows_hbm * LANE != hw:
            # zero-pad BOTH tensors identically: min(0,0)=0 and 0+0=0 -> exact result.
            x = jnp.pad(x, ((0, 0), (0, rows_hbm * LANE - hw)))
        return x.reshape(c, rows_hbm, LANE)

    o3 = _prep(output)
    t3 = _prep(target)

    needs_mask = coverage_rows > rows_hbm
    max_block = _cdiv(rows_hbm, tile_rows) - 1
    # Avoid issuing DMAs for tiles that lie entirely past the array end: clamp their
    # block index to the last valid block (their contribution is fully masked anyway).
    clamp_blocks = (n_tiles - 1) * tile_rows >= rows_hbm

    def _row_block(p, k):
        blk = p * steps_per_core + k
        if clamp_blocks:
            blk = jnp.minimum(blk, max_block)
        return blk

    in_spec = pl.BlockSpec((c, tile_rows, LANE), lambda p, k: (0, _row_block(p, k), 0))
    out_spec = pl.BlockSpec((1, c, LANE), lambda p, k: (p, 0, 0))

    pipeline_bytes = 2 * tile_rows * row_pair_bytes          # 2 buffers x (o + t) tile
    acc_bytes = 2 * c * sub * LANE * 4
    out_bytes = 2 * 2 * n_par * c * LANE * 4
    vmem_limit = int(min(VMEM_CAP_BYTES,
                         max(24 * 1024 * 1024,
                             pipeline_bytes + acc_bytes + out_bytes + (4 << 20))))

    kernel = _make_dice_kernel(tile_rows, sub, steps_per_core, rows_hbm, needs_mask)

    inter_part, total_part = pl.pallas_call(
        kernel,
        out_shape=(jax.ShapeDtypeStruct((n_par, c, LANE), jnp.float32),
                   jax.ShapeDtypeStruct((n_par, c, LANE), jnp.float32)),
        grid_spec=pltpu.PrefetchScalarGridSpec(
            num_scalar_prefetch=0,
            grid=(n_par, steps_per_core),
            in_specs=[in_spec, in_spec],
            out_specs=[out_spec, out_spec],
            scratch_shapes=[
                pltpu.VMEM((c, sub, LANE), jnp.float32),   # running sum of min(o, t)
                pltpu.VMEM((c, sub, LANE), jnp.float32),   # running sum of o + t
            ],
        ),
        compiler_params=pltpu.CompilerParams(
            dimension_semantics=("parallel", "arbitrary"),
            vmem_limit_bytes=vmem_limit,
        ),
    )(o3, t3)

    inter = jnp.sum(inter_part, axis=(0, 2))             # (C,)  sum of min
    inter_plus_union = jnp.sum(total_part, axis=(0, 2))  # (C,)  min + max == o + t
    eps = jnp.float32(1e-08)
    dice = (2.0 * inter + eps) / (inter_plus_union + eps)
    return jnp.float32(1.0) - jnp.mean(dice)


def _reference_dice_loss(output, target):
    # Pure-JAX reference mirroring the PyTorch forward (f32 accumulation for checking).
    o = jnp.squeeze(output, axis=0) if output.shape[0] == 1 else output
    t = jnp.squeeze(target, axis=0) if target.shape[0] == 1 else target
    o = o.astype(jnp.float32)
    t = t.astype(jnp.float32)
    inter = jnp.sum(jnp.minimum(o, t), axis=(1, 2))
    union = jnp.sum(jnp.maximum(o, t), axis=(1, 2))
    dice = (2.0 * inter + 1e-08) / (inter + union + 1e-08)
    return 1.0 - jnp.mean(dice)


if __name__ == "__main__":
    key = jax.random.PRNGKey(0)
    ks = jax.random.split(key, 10)

    # Case 1: small demo shape implied by the module (singleton batch, NCHW), single step.
    out1 = jax.random.uniform(ks[0], (1, 4, 16, 16), dtype=jnp.float32)
    tgt1 = (jax.random.uniform(ks[1], (1, 4, 16, 16), dtype=jnp.float32) > 0.5).astype(jnp.float32)
    l1 = dice_loss(out1, tgt1)
    jax.block_until_ready(l1)
    r1 = _reference_dice_loss(out1, tgt1)
    assert jnp.allclose(l1, r1, atol=3e-5, rtol=1e-4), (l1, r1)

    # Case 2: larger spatial extent, lane-aligned -> no padding, no masking.
    out2 = jax.random.uniform(ks[2], (1, 2, 256, 192), dtype=jnp.float32)
    tgt2 = (jax.random.uniform(ks[3], (1, 2, 256, 192), dtype=jnp.float32) > 0.5).astype(jnp.float32)
    l2 = dice_loss(out2, tgt2)
    jax.block_until_ready(l2)
    r2 = _reference_dice_loss(out2, tgt2)
    assert jnp.allclose(l2, r2, atol=3e-5, rtol=1e-4), (l2, r2)

    # Case 3: bf16 inputs streamed natively, f32 in-kernel accumulation.
    out3 = jax.random.uniform(ks[4], (1, 4, 64, 64), dtype=jnp.float32).astype(jnp.bfloat16)
    tgt3 = (jax.random.uniform(ks[5], (1, 4, 64, 64), dtype=jnp.float32) > 0.5).astype(jnp.bfloat16)
    l3 = dice_loss(out3, tgt3)
    jax.block_until_ready(l3)
    r3 = _reference_dice_loss(out3, tgt3)
    assert jnp.allclose(l3, r3, atol=1e-3, rtol=1e-3), (l3, r3)

    # Case 4: tiny per-step budget forces the multi-tile + parallel-axis + in-kernel
    # ragged-tail masking (and clamped block index) paths on a small tensor.
    out4 = jax.random.uniform(ks[6], (1, 3, 40, 64), dtype=jnp.float32)
    tgt4 = (jax.random.uniform(ks[7], (1, 3, 40, 64), dtype=jnp.float32) > 0.5).astype(jnp.float32)
    l4 = dice_loss(out4, tgt4, _pair_step_bytes=24 * 1024)
    jax.block_until_ready(l4)
    r4 = _reference_dice_loss(out4, tgt4)
    assert jnp.allclose(l4, r4, atol=3e-5, rtol=1e-4), (l4, r4)

    # Case 5: spatial size not a multiple of 128 -> exercises the (tiny) pad branch.
    out5 = jax.random.uniform(ks[8], (1, 4, 10, 10), dtype=jnp.float32)
    tgt5 = (jax.random.uniform(ks[9], (1, 4, 10, 10), dtype=jnp.float32) > 0.5).astype(jnp.float32)
    l5 = dice_loss(out5, tgt5)
    jax.block_until_ready(l5)
    r5 = _reference_dice_loss(out5, tgt5)
    assert jnp.allclose(l5, r5, atol=3e-5, rtol=1e-4), (l5, r5)

    print("KERNEL_OK")
</pallas_src>

<mosaic_0001>
module attributes {stable_mosaic.version = 11 : i64} {
  func.func @kernel(%arg0: i32, %arg1: i32, %arg2: memref<4x8x128xf32, #tpu.memory_space<vmem>>, %arg3: memref<4x8x128xf32, #tpu.memory_space<vmem>>, %arg4: memref<1x4x128xf32, #tpu.memory_space<vmem>>, %arg5: memref<1x4x128xf32, #tpu.memory_space<vmem>>, %arg6: memref<4x8x128xf32, #tpu.memory_space<vmem>>, %arg7: memref<4x8x128xf32, #tpu.memory_space<vmem>>) attributes {dimension_semantics = [#tpu.dimension_semantics<parallel>, #tpu.dimension_semantics<arbitrary>], iteration_bounds = array<i64: 1, 1>, scalar_prefetch = 0 : i64, scratch_operands = 2 : i64, tpu.core_type = #tpu.core_type<tc>, window_params = [{transform_indices = @transform_0, window_bounds = array<i64: 4, 8, 128>}, {transform_indices = @transform_1, window_bounds = array<i64: 4, 8, 128>}, {transform_indices = @transform_2, window_bounds = array<i64: 1, 4, 128>}, {transform_indices = @transform_3, window_bounds = array<i64: 1, 4, 128>}]} {
    %c0_i32 = arith.constant 0 : i32
    %0 = arith.cmpi eq, %arg1, %c0_i32 : i32
    %1 = arith.extui %0 : i1 to i32
    %c0_i32_0 = arith.constant 0 : i32
    %2 = arith.cmpi ne, %1, %c0_i32_0 : i32
    scf.if %2 {
      %cst = arith.constant 0.000000e+00 : f32
      %20 = vector.broadcast %cst : f32 to vector<4x8x128xf32>
      %c0_19 = arith.constant 0 : index
      %c0_20 = arith.constant 0 : index
      %c0_21 = arith.constant 0 : index
      %21 = vector.load %arg6[%c0_19, %c0_20, %c0_21] : memref<4x8x128xf32, #tpu.memory_space<vmem>>, vector<4x8x128xf32>
      tpu.vector_store %arg6[%c0_19, %c0_20, %c0_21], %20 {strides = array<i32>} : memref<4x8x128xf32, #tpu.memory_space<vmem>>, vector<4x8x128xf32>,
      %cst_22 = arith.constant 0.000000e+00 : f32
      %22 = vector.broadcast %cst_22 : f32 to vector<4x8x128xf32>
      %c0_23 = arith.constant 0 : index
      %c0_24 = arith.constant 0 : index
      %c0_25 = arith.constant 0 : index
      %23 = vector.load %arg7[%c0_23, %c0_24, %c0_25] : memref<4x8x128xf32, #tpu.memory_space<vmem>>, vector<4x8x128xf32>
      tpu.vector_store %arg7[%c0_23, %c0_24, %c0_25], %22 {strides = array<i32>} : memref<4x8x128xf32, #tpu.memory_space<vmem>>, vector<4x8x128xf32>,
    } else {
    }
    %c0_i32_1 = arith.constant 0 : i32
    %c8_i32 = arith.constant 8 : i32
    %3 = arith.muli %c0_i32_1, %c8_i32 : i32
    %4 = tpu.assume_multiple %3, 8 : i32
    %c0 = arith.constant 0 : index
    %5 = arith.index_cast %4 : i32 to index
    %c0_2 = arith.constant 0 : index
    %6 = vector.load %arg2[%c0, %5, %c0_2] : memref<4x8x128xf32, #tpu.memory_space<vmem>>, vector<4x8x128xf32>
    %c0_3 = arith.constant 0 : index
    %7 = arith.index_cast %4 : i32 to index
    %c0_4 = arith.constant 0 : index
    %8 = vector.load %arg3[%c0_3, %7, %c0_4] : memref<4x8x128xf32, #tpu.memory_space<vmem>>, vector<4x8x128xf32>
    %9 = arith.minimumf %6, %8 : vector<4x8x128xf32>
    %10 = arith.addf %6, %8 : vector<4x8x128xf32>
    %c0_5 = arith.constant 0 : index
    %c0_6 = arith.constant 0 : index
    %c0_7 = arith.constant 0 : index
    %11 = vector.load %arg6[%c0_5, %c0_6, %c0_7] : memref<4x8x128xf32, #tpu.memory_space<vmem>>, vector<4x8x128xf32>
    %12 = arith.addf %11, %9 : vector<4x8x128xf32>
    %c0_8 = arith.constant 0 : index
    %c0_9 = arith.constant 0 : index
    %c0_10 = arith.constant 0 : index
    %13 = vector.load %arg6[%c0_8, %c0_9, %c0_10] : memref<4x8x128xf32, #tpu.memory_space<vmem>>, vector<4x8x128xf32>
    tpu.vector_store %arg6[%c0_8, %c0_9, %c0_10], %12 {strides = array<i32>} : memref<4x8x128xf32, #tpu.memory_space<vmem>>, vector<4x8x128xf32>,
    %c0_11 = arith.constant 0 : index
    %c0_12 = arith.constant 0 : index
    %c0_13 = arith.constant 0 : index
    %14 = vector.load %arg7[%c0_11, %c0_12, %c0_13] : memref<4x8x128xf32, #tpu.memory_space<vmem>>, vector<4x8x128xf32>
    %15 = arith.addf %14, %10 : vector<4x8x128xf32>
    %c0_14 = arith.constant 0 : index
    %c0_15 = arith.constant 0 : index
    %c0_16 = arith.constant 0 : index
    %16 = vector.load %arg7[%c0_14, %c0_15, %c0_16] : memref<4x8x128xf32, #tpu.memory_space<vmem>>, vector<4x8x128xf32>
    tpu.vector_store %arg7[%c0_14, %c0_15, %c0_16], %15 {strides = array<i32>} : memref<4x8x128xf32, #tpu.memory_space<vmem>>, vector<4x8x128xf32>,
    %c1_i32 = arith.constant 1 : i32
    %c0_i32_17 = arith.constant 0 : i32
    %17 = arith.cmpi eq, %arg1, %c0_i32_17 : i32
    %18 = arith.extui %17 : i1 to i32
    %c0_i32_18 = arith.constant 0 : i32
    %19 = arith.cmpi ne, %18, %c0_i32_18 : i32
    scf.if %19 {
      %c0_19 = arith.constant 0 : index
      %c0_20 = arith.constant 0 : index
      %c0_21 = arith.constant 0 : index
      %20 = vector.load %arg6[%c0_19, %c0_20, %c0_21] : memref<4x8x128xf32, #tpu.memory_space<vmem>>, vector<4x8x128xf32>
      %cst = arith.constant dense<0.000000e+00> : vector<4x128xf32>
      %21 = vector.multi_reduction <add>, %20, %cst [1] : vector<4x8x128xf32> to vector<4x128xf32>
      %c0_22 = arith.constant 0 : index
      %c0_23 = arith.constant 0 : index
      %c0_24 = arith.constant 0 : index
      %22 = vector.load %arg4[%c0_22, %c0_23, %c0_24] : memref<1x4x128xf32, #tpu.memory_space<vmem>>, vector<1x4x128xf32>
      %23 = vector.shape_cast %22 : vector<1x4x128xf32> to vector<4x128xf32>
      %24 = vector.shape_cast %21 : vector<4x128xf32> to vector<1x4x128xf32>
      tpu.vector_store %arg4[%c0_22, %c0_23, %c0_24], %24 {strides = array<i32>} : memref<1x4x128xf32, #tpu.memory_space<vmem>>, vector<1x4x128xf32>,
      %c0_25 = arith.constant 0 : index
      %c0_26 = arith.constant 0 : index
      %c0_27 = arith.constant 0 : index
      %25 = vector.load %arg7[%c0_25, %c0_26, %c0_27] : memref<4x8x128xf32, #tpu.memory_space<vmem>>, vector<4x8x128xf32>
      %cst_28 = arith.constant dense<0.000000e+00> : vector<4x128xf32>
      %26 = vector.multi_reduction <add>, %25, %cst_28 [1] : vector<4x8x128xf32> to vector<4x128xf32>
      %c0_29 = arith.constant 0 : index
      %c0_30 = arith.constant 0 : index
      %c0_31 = arith.constant 0 : index
      %27 = vector.load %arg5[%c0_29, %c0_30, %c0_31] : memref<1x4x128xf32, #tpu.memory_space<vmem>>, vector<1x4x128xf32>
      %28 = vector.shape_cast %27 : vector<1x4x128xf32> to vector<4x128xf32>
      %29 = vector.shape_cast %26 : vector<4x128xf32> to vector<1x4x128xf32>
      tpu.vector_store %arg5[%c0_29, %c0_30, %c0_31], %29 {strides = array<i32>} : memref<1x4x128xf32, #tpu.memory_space<vmem>>, vector<1x4x128xf32>,
    } else {
    }
    return
  }
  func.func @transform_0(%arg0: i32, %arg1: i32) -> (i32, i32, i32) {
    %c1_i32 = arith.constant 1 : i32
    %0 = arith.muli %arg0, %c1_i32 : i32
    %1 = arith.addi %0, %arg1 : i32
    %c0_i32 = arith.constant 0 : i32
    %c0_i32_0 = arith.constant 0 : i32
    %c0_i32_1 = arith.constant 0 : i32
    return %c0_i32, %1, %c0_i32_0 : i32, i32, i32
  }
  func.func @transform_1(%arg0: i32, %arg1: i32) -> (i32, i32, i32) {
    %c1_i32 = arith.constant 1 : i32
    %0 = arith.muli %arg0, %c1_i32 : i32
    %1 = arith.addi %0, %arg1 : i32
    %c0_i32 = arith.constant 0 : i32
    %c0_i32_0 = arith.constant 0 : i32
    %c0_i32_1 = arith.constant 0 : i32
    return %c0_i32, %1, %c0_i32_0 : i32, i32, i32
  }
  func.func @transform_2(%arg0: i32, %arg1: i32) -> (i32, i32, i32) {
    %c0_i32 = arith.constant 0 : i32
    %c0_i32_0 = arith.constant 0 : i32
    %c0_i32_1 = arith.constant 0 : i32
    return %arg0, %c0_i32, %c0_i32_0 : i32, i32, i32
  }
  func.func @transform_3(%arg0: i32, %arg1: i32) -> (i32, i32, i32) {
    %c0_i32 = arith.constant 0 : i32
    %c0_i32_0 = arith.constant 0 : i32
    %c0_i32_1 = arith.constant 0 : i32
    return %arg0, %c0_i32, %c0_i32_0 : i32, i32, i32
  }
}

</mosaic_0001>

<llo_original>
// kernel: tpu_custom_call.1
$region0: #{tpu_custom_call.1}
  #allocation0 [shape = 'u32[]', space=smem, size = 0x4, offset = 0x4, fixed_abs, tag = 'smem constant byte address 0x4 - core index']
  #allocation1 [shape = 'u32[72,128]{1,0:T(1,128)}', space=vmem, size = 0x9000, scoped, tag = 'internal scratch']
  #allocation2 [shape = 'f32[4,8,128]{2,1,0:T(8,128)}', space=vmem, size = 0x4000, scoped, tag = 'scratch operand']
  #allocation3 [shape = 'f32[4,8,128]{2,1,0:T(8,128)}', space=vmem, size = 0x4000, scoped, tag = 'scratch operand']
  %s0 = inlined_call_operand.hbm [shape: f32[4,8,128], index: 0, kind: input, shape index: {}]
  %s1 = inlined_call_operand.hbm [shape: f32[4,8,128], index: 1, kind: input, shape index: {}]
  %s2 = inlined_call_operand.hbm [shape: f32[1,4,128], index: 2, kind: output, shape index: {0}]
  %s3 = inlined_call_operand.hbm [shape: f32[1,4,128], index: 3, kind: output, shape index: {1}]
  %4 = xla_tuple %s2, %s3
  %s5 = sld [smem:[#allocation0]]
  $region42: #{tpu_custom_call.1} parent=0
    _
  %s7 = ssub.s32 1, %s5
  %s8 = scalar_select 0, %s7, %s5
  $region1: #{tpu_custom_call.1} parent=0
    #allocation4 [shape = 'u8[16384]{0}', space=vmem, size = 0x4000, scoped, tag = 'input window, operand 0, single buffered']
    #allocation5 [shape = 's32[1]{0}', space=sflag, size = 0x4, scoped, tag = 'scoped memory for tpu_custom_call.1']
    #allocation6 [shape = 's32[1]{0}', space=sflag, size = 0x4, scoped, tag = 'scoped memory for tpu_custom_call.1']
    #allocation7 [shape = 'u8[16384]{0}', space=vmem, size = 0x4000, scoped, tag = 'input window, operand 1, single buffered']
    #allocation8 [shape = 's32[1]{0}', space=sflag, size = 0x4, scoped, tag = 'scoped memory for tpu_custom_call.1']
    #allocation9 [shape = 'u8[2048]{0}', space=vmem, size = 0x800, scoped, tag = 'output window, operand 0, single buffered']
    #allocation10 [shape = 'u8[2048]{0}', space=vmem, size = 0x800, scoped, tag = 'output window, operand 1, single buffered']
    #allocation11 [shape = 's32[1]{0}', space=sflag, size = 0x4, scoped, tag = 'scoped memory for tpu_custom_call.1']
    %9 = vsyncpa [#allocation5], 0
    %10 = vsyncpa [#allocation8], 0
    %11 = vsyncpa [#allocation6], 0
    %12 = vsyncpa [#allocation11], 0
    // Predicated region
    $region2: #{tpu_custom_call.1} parent=1 // pred_check
      _
    $region3: #{tpu_custom_call.1} parent=1 // pred_check_branch
      %14 = sbr.rel (0) target = $region5
    $region4: #{tpu_custom_call.1} parent=1 // pred_region
      %s15 = sadd.s32 0, 0
      %17 = vsyncadd [#allocation5], 0
      %s18 = smul.addr %s15, 8
      %s19 = scalar_lea.hbm %s0, %s18
      %s20 = sshll.u32 %s19, 4
      %s21 = int_to_ptr.hbm [resolvable:$true] %s20
      %s22 = sshll.u32 [#allocation4], 4
      %s23 = int_to_ptr.vmem [resolvable:$true] %s22
      %28 = dma.hbm_to_vmem [thread:$0]  %s21, 512, %s23, [#allocation5], 128, 128, 8
    $region5: #{tpu_custom_call.1} parent=1 // pred_fallthru
      _
    // Predicated region
    $region6: #{tpu_custom_call.1} parent=1 // pred_check
      _
    $region7: #{tpu_custom_call.1} parent=1 // pred_check_branch
      %30 = sbr.rel (0) target = $region9
    $region8: #{tpu_custom_call.1} parent=1 // pred_region
      %s31 = sadd.s32 0, 0
      %33 = vsyncadd [#allocation8], 0
      %s34 = smul.addr %s31, 8
      %s35 = scalar_lea.hbm %s1, %s34
      %s36 = sshll.u32 %s35, 4
      %s37 = int_to_ptr.hbm [resolvable:$true] %s36
      %s38 = sshll.u32 [#allocation7], 4
      %s39 = int_to_ptr.vmem [resolvable:$true] %s38
      %44 = dma.hbm_to_vmem [thread:$0]  %s37, 512, %s39, [#allocation8], 128, 128, 8
    $region9: #{tpu_custom_call.1} parent=1 // pred_fallthru
      _
    // Predicated region
    $region10: #{tpu_custom_call.1} parent=1 // pred_check
      _
    $region11: #{tpu_custom_call.1} parent=1 // pred_check_branch
      %46 = sbr.rel (0) target = $region13
    $region12: #{tpu_custom_call.1} parent=1 // pred_region
      %48 = dma.done [#allocation5], 512
    $region13: #{tpu_custom_call.1} parent=1 // pred_fallthru
      _
    // Predicated region
    $region14: #{tpu_custom_call.1} parent=1 // pred_check
      _
    $region15: #{tpu_custom_call.1} parent=1 // pred_check_branch
      %50 = sbr.rel (0) target = $region17
    $region16: #{tpu_custom_call.1} parent=1 // pred_region
      %52 = dma.done [#allocation8], 512
    $region17: #{tpu_custom_call.1} parent=1 // pred_fallthru
      _
    %s53 = sadd.s32 0, 0
    %s54 = sadd.s32 0, 0
    %p55 = scmp.eq.s32.totalorder 0, 0
    // Predicated region
    $region18: #{tpu_custom_call.1} parent=1 // pred_check
      %p56 = pneg %p55
    $region19: #{tpu_custom_call.1} parent=1 // pred_check_branch
      %58 = sbr.rel (%p56) target = $region21
    $region20: #{tpu_custom_call.1} parent=1 // pred_region
      %59 = vst [vmem:[#allocation2] sm:$0xff] 0.0
      %60 = vst [vmem:[#allocation2 + $0x8] sm:$0xff] 0.0
      %61 = vst [vmem:[#allocation2 + $0x10] sm:$0xff] 0.0
      %62 = vst [vmem:[#allocation2 + $0x18] sm:$0xff] 0.0
      %63 = vst [vmem:[#allocation3] sm:$0xff] 0.0
      %64 = vst [vmem:[#allocation3 + $0x8] sm:$0xff] 0.0
      %65 = vst [vmem:[#allocation3 + $0x10] sm:$0xff] 0.0
      %66 = vst [vmem:[#allocation3 + $0x18] sm:$0xff] 0.0
    $region21: #{tpu_custom_call.1} parent=1 // pred_fallthru
      _
    %v67 = vld [vmem:[#allocation4] sm:$0xff]
    %v68 = vld [vmem:[#allocation4 + $0x8] sm:$0xff]
    %v69 = vld [vmem:[#allocation4 + $0x10] sm:$0xff]
    %v70 = vld [vmem:[#allocation4 + $0x18] sm:$0xff]
    %v71 = vld [vmem:[#allocation7] sm:$0xff]
    %v72 = vld [vmem:[#allocation7 + $0x8] sm:$0xff]
    %v73 = vld [vmem:[#allocation7 + $0x10] sm:$0xff]
    %v74 = vld [vmem:[#allocation7 + $0x18] sm:$0xff]
    %v75 = vmin.f32 %v67, %v71
    %v76 = vmin.f32 %v68, %v72
    %v77 = vmin.f32 %v69, %v73
    %v78 = vmin.f32 %v70, %v74
    %v79 = vadd.f32 %v67, %v71
    %v80 = vadd.f32 %v68, %v72
    %v81 = vadd.f32 %v69, %v73
    %v82 = vadd.f32 %v70, %v74
    %v83 = vld [vmem:[#allocation2] sm:$0xff]
    %v84 = vld [vmem:[#allocation2 + $0x8] sm:$0xff]
    %v85 = vld [vmem:[#allocation2 + $0x10] sm:$0xff]
    %v86 = vld [vmem:[#allocation2 + $0x18] sm:$0xff]
    %v87 = vadd.f32 %v83, %v75
    %v88 = vadd.f32 %v84, %v76
    %v89 = vadd.f32 %v85, %v77
    %v90 = vadd.f32 %v86, %v78
    %91 = vst [vmem:[#allocation2] sm:$0xff] %v87
    %92 = vst [vmem:[#allocation2 + $0x8] sm:$0xff] %v88
    %93 = vst [vmem:[#allocation2 + $0x10] sm:$0xff] %v89
    %94 = vst [vmem:[#allocation2 + $0x18] sm:$0xff] %v90
    %v95 = vld [vmem:[#allocation3] sm:$0xff]
    %v96 = vld [vmem:[#allocation3 + $0x8] sm:$0xff]
    %v97 = vld [vmem:[#allocation3 + $0x10] sm:$0xff]
    %v98 = vld [vmem:[#allocation3 + $0x18] sm:$0xff]
    %v99 = vadd.f32 %v95, %v79
    %v100 = vadd.f32 %v96, %v80
    %v101 = vadd.f32 %v97, %v81
    %v102 = vadd.f32 %v98, %v82
    %103 = vst [vmem:[#allocation3] sm:$0xff] %v99
    %104 = vst [vmem:[#allocation3 + $0x8] sm:$0xff] %v100
    %105 = vst [vmem:[#allocation3 + $0x10] sm:$0xff] %v101
    %106 = vst [vmem:[#allocation3 + $0x18] sm:$0xff] %v102
    // Predicated region
    $region22: #{tpu_custom_call.1} parent=1 // pred_check
      %p107 = pneg %p55
    $region23: #{tpu_custom_call.1} parent=1 // pred_check_branch
      %109 = sbr.rel (%p107) target = $region25
    $region24: #{tpu_custom_call.1} parent=1 // pred_region
      %v110 = vld [vmem:[#allocation2] sm:$0xff]
      %v111 = vld [vmem:[#allocation2 + $0x8] sm:$0xff]
      %v112 = vld [vmem:[#allocation2 + $0x10] sm:$0xff]
      %v113 = vld [vmem:[#allocation2 + $0x18] sm:$0xff]
      %v114 = vrot.slane %v110, 4
      %v115 = vadd.f32 %v110, %v114
      %v116 = vrot.slane %v115, 2
      %v117 = vadd.f32 %v115, %v116
      %v118 = vrot.slane %v117, 1
      %v119 = vadd.f32 %v117, %v118
      %v120 = vrot.slane %v111, 4
      %v121 = vadd.f32 %v111, %v120
      %v122 = vrot.slane %v121, 2
      %v123 = vadd.f32 %v121, %v122
      %v124 = vrot.slane %v123, 1
      %v125 = vadd.f32 %v123, %v124
      %v126 = vrot.slane %v112, 4
      %v127 = vadd.f32 %v112, %v126
      %v128 = vrot.slane %v127, 2
      %v129 = vadd.f32 %v127, %v128
      %v130 = vrot.slane %v129, 1
      %v131 = vadd.f32 %v129, %v130
      %v132 = vrot.slane %v113, 4
      %v133 = vadd.f32 %v113, %v132
      %v134 = vrot.slane %v133, 2
      %v135 = vadd.f32 %v133, %v134
      %v136 = vrot.slane %v135, 1
      %v137 = vadd.f32 %v135, %v136
      %vm142 = vcmask 1041409
      %v143 = vsel %vm142, %v125, %v119
      %vm144 = vcmask 1042434
      %v145 = vsel %vm144, %v131, %v143
      %vm146 = vcmask 1043459
      %v147 = vsel %vm146, %v137, %v145
      %149 = vst [vmem:[#allocation9] sm:$0xf] %v147
      %v150 = vld [vmem:[#allocation3] sm:$0xff]
      %v151 = vld [vmem:[#allocation3 + $0x8] sm:$0xff]
      %v152 = vld [vmem:[#allocation3 + $0x10] sm:$0xff]
      %v153 = vld [vmem:[#allocation3 + $0x18] sm:$0xff]
      %v154 = vrot.slane %v150, 4
      %v155 = vadd.f32 %v150, %v154
      %v156 = vrot.slane %v155, 2
      %v157 = vadd.f32 %v155, %v156
      %v158 = vrot.slane %v157, 1
      %v159 = vadd.f32 %v157, %v158
      %v160 = vrot.slane %v151, 4
      %v161 = vadd.f32 %v151, %v160
      %v162 = vrot.slane %v161, 2
      %v163 = vadd.f32 %v161, %v162
      %v164 = vrot.slane %v163, 1
      %v165 = vadd.f32 %v163, %v164
      %v166 = vrot.slane %v152, 4
      %v167 = vadd.f32 %v152, %v166
      %v168 = vrot.slane %v167, 2
      %v169 = vadd.f32 %v167, %v168
      %v170 = vrot.slane %v169, 1
      %v171 = vadd.f32 %v169, %v170
      %v172 = vrot.slane %v153, 4
      %v173 = vadd.f32 %v153, %v172
      %v174 = vrot.slane %v173, 2
      %v175 = vadd.f32 %v173, %v174
      %v176 = vrot.slane %v175, 1
      %v177 = vadd.f32 %v175, %v176
      %v182 = vsel %vm142, %v165, %v159
      %v183 = vsel %vm144, %v171, %v182
      %v184 = vsel %vm146, %v177, %v183
      %186 = vst [vmem:[#allocation10] sm:$0xf] %v184
    $region25: #{tpu_custom_call.1} parent=1 // pred_fallthru
      _
    // Predicated region
    $region26: #{tpu_custom_call.1} parent=1 // pred_check
      _
    $region27: #{tpu_custom_call.1} parent=1 // pred_check_branch
      %188 = sbr.rel (0) target = $region29
    $region28: #{tpu_custom_call.1} parent=1 // pred_region
      %190 = vsyncadd [#allocation6], 0
      %s192 = sshll.u32 [#allocation9], 4
      %s193 = int_to_ptr.vmem [resolvable:$true] %s192
      %s194 = sshll.u32 %s2, 4
      %s195 = int_to_ptr.hbm [resolvable:$true] %s194
      %197 = dma.vmem_to_hbm [thread:$0]  %s193, 64, %s195, [#allocation6]
    $region29: #{tpu_custom_call.1} parent=1 // pred_fallthru
      _
    // Predicated region
    $region30: #{tpu_custom_call.1} parent=1 // pred_check
      _
    $region31: #{tpu_custom_call.1} parent=1 // pred_check_branch
      %199 = sbr.rel (0) target = $region33
    $region32: #{tpu_custom_call.1} parent=1 // pred_region
      %201 = vsyncadd [#allocation11], 0
      %s203 = sshll.u32 [#allocation10], 4
      %s204 = int_to_ptr.vmem [resolvable:$true] %s203
      %s205 = sshll.u32 %s3, 4
      %s206 = int_to_ptr.hbm [resolvable:$true] %s205
      %208 = dma.vmem_to_hbm [thread:$0]  %s204, 64, %s206, [#allocation11]
    $region33: #{tpu_custom_call.1} parent=1 // pred_fallthru
      _
    // Predicated region
    $region34: #{tpu_custom_call.1} parent=1 // pred_check
      _
    $region35: #{tpu_custom_call.1} parent=1 // pred_check_branch
      %210 = sbr.rel (0) target = $region37
    $region36: #{tpu_custom_call.1} parent=1 // pred_region
      %212 = dma.done [#allocation6], 64
    $region37: #{tpu_custom_call.1} parent=1 // pred_fallthru
      _
    // Predicated region
    $region38: #{tpu_custom_call.1} parent=1 // pred_check
      _
    $region39: #{tpu_custom_call.1} parent=1 // pred_check_branch
      %214 = sbr.rel (0) target = $region41
    $region40: #{tpu_custom_call.1} parent=1 // pred_region
      %216 = dma.done [#allocation11], 64
    $region41: #{tpu_custom_call.1} parent=1 // pred_fallthru
      _
    %217 = vsyncpa [#allocation5], 1
    %218 = vsyncpa [#allocation8], 1
    %219 = vsyncpa [#allocation6], 1
    %220 = vsyncpa [#allocation11], 1

</llo_original>
